<compile_context>
chip_gen: v5e
topology: v5e:2x2
jax: 0.10.0
libtpu: 0.0.40
codegen_flags: <defaults>
</compile_context>

<pallas_src>
import functools

import jax
import jax.numpy as jnp
from jax.experimental import pallas as pl
from jax.experimental.pallas import tpu as pltpu

EPS = 1e-5


def _stats_kernel(x_ref, wt_ref, sum_ref, sumsq_ref):
    """Per-tile deconv (+ReLU) and partial BN statistics.

    x:  (Cin, TM)   spatial tile, lane-dense on TM
    wt: (C4, Cin)   tap-major transposed ConvTranspose2d weight (resident)
    outputs: per-(tap, channel) partial sum / sum-of-squares, shape (C4, 1).
    """
    # stride == kernel  =>  deconv is a pure channel matmul (MXU; K=Cin is
    # degenerate but the kernel is HBM-bound, so this is not the bottleneck).
    y = jnp.dot(wt_ref[...], x_ref[...], preferred_element_type=jnp.float32)
    y = jnp.maximum(y, 0.0)
    sum_ref[...] = jnp.sum(y, axis=1, keepdims=True)        # (C4, 1)
    sumsq_ref[...] = jnp.sum(y * y, axis=1, keepdims=True)  # (C4, 1)


def _apply_kernel(x_ref, wt_ref, scale_ref, shift_ref, o_ref):
    """Recompute deconv+ReLU and apply the fused BatchNorm (y*scale + shift)."""
    y = jnp.dot(wt_ref[...], x_ref[...], preferred_element_type=jnp.float32)
    y = jnp.maximum(y, 0.0)
    o_ref[...] = y * scale_ref[...] + shift_ref[...]


def _pick_tile(hw, cap):
    """Largest divisor of hw that is <= cap, preferring multiples of 128."""
    if hw <= cap:
        return hw
    best, best128 = 1, 0
    d = 1
    while d * d <= hw:
        if hw % d == 0:
            for t in (d, hw // d):
                if t <= cap:
                    best = max(best, t)
                    if t % 128 == 0:
                        best128 = max(best128, t)
        d += 1
    return best128 if best128 else best


def deconv_block_5x5(x, weight, gamma, beta, *, tile_cap=16384):
    """Forward of deConvBlock5x5.

    x:      (N, Cin, H, W)   float32, NCHW
    weight: (Cin, Cout, 2, 2) ConvTranspose2d weight (PyTorch layout)
    gamma, beta: (Cout,)     BatchNorm2d affine params
    returns (N, Cout, 2H, 2W) float32
    """
    N, Cin, H, W = x.shape
    Cin_w, Cout, kH, kW = weight.shape
    assert Cin_w == Cin
    kpos = kH * kW
    C4 = Cout * kpos
    HW = H * W
    TM = _pick_tile(HW, tile_cap)
    T = HW // TM

    # Contiguous reshape only -- no input transpose pass over HBM.
    x3 = x.reshape(N, Cin, HW).astype(jnp.float32)
    # Tap-major transposed weight: row (kh*kW + kw)*Cout + c, col Cin.
    wt = jnp.transpose(weight, (2, 3, 1, 0)).reshape(C4, Cin).astype(jnp.float32)

    # VMEM budget: double-buffered x tile + out tile (+ resident weight/BN).
    vmem_need = 2 * (Cin + C4) * TM * 4 + (2 << 20)
    vmem_limit = int(min(max(32 << 20, vmem_need), 48 << 20))

    # ---------- pass 1: per-tile partial statistics (fully parallel) ----------
    psum, psumsq = pl.pallas_call(
        _stats_kernel,
        out_shape=(jax.ShapeDtypeStruct((N, T, C4, 1), jnp.float32),
                   jax.ShapeDtypeStruct((N, T, C4, 1), jnp.float32)),
        grid_spec=pltpu.PrefetchScalarGridSpec(
            num_scalar_prefetch=0,
            grid=(N, T),
            in_specs=[
                pl.BlockSpec((None, Cin, TM), lambda n, t: (n, 0, t)),
                pl.BlockSpec((C4, Cin), lambda n, t: (0, 0)),
            ],
            out_specs=[
                pl.BlockSpec((None, None, C4, 1), lambda n, t: (n, t, 0, 0)),
                pl.BlockSpec((None, None, C4, 1), lambda n, t: (n, t, 0, 0)),
            ]),
        compiler_params=pltpu.CompilerParams(
            dimension_semantics=("parallel", "parallel"),
            vmem_limit_bytes=vmem_limit),
    )(x3, wt)

    # ---------- fold partials -> per-channel BN scale/shift (tiny XLA ops) ----------
    count = float(N * HW * kpos)
    sum_c = jnp.sum(psum, axis=(0, 1)).reshape(kpos, Cout).sum(axis=0)      # (Cout,)
    sumsq_c = jnp.sum(psumsq, axis=(0, 1)).reshape(kpos, Cout).sum(axis=0)  # (Cout,)
    mean = sum_c / count
    # Biased variance (BatchNorm training normalization), clamped against
    # catastrophic cancellation in E[y^2] - E[y]^2.
    var = jnp.maximum(sumsq_c / count - mean * mean, 0.0)
    scale_c = gamma.astype(jnp.float32) * jax.lax.rsqrt(var + EPS)
    shift_c = beta.astype(jnp.float32) - mean * scale_c
    scale = jnp.tile(scale_c, kpos).reshape(C4, 1)   # broadcast to all taps
    shift = jnp.tile(shift_c, kpos).reshape(C4, 1)

    # ---------- pass 2: normalize + write (fully parallel, lane-dense out) ----------
    out3 = pl.pallas_call(
        _apply_kernel,
        out_shape=jax.ShapeDtypeStruct((N, C4, HW), jnp.float32),
        grid_spec=pltpu.PrefetchScalarGridSpec(
            num_scalar_prefetch=0,
            grid=(N, T),
            in_specs=[
                pl.BlockSpec((None, Cin, TM), lambda n, t: (n, 0, t)),
                pl.BlockSpec((C4, Cin), lambda n, t: (0, 0)),
                pl.BlockSpec((C4, 1), lambda n, t: (0, 0)),
                pl.BlockSpec((C4, 1), lambda n, t: (0, 0)),
            ],
            out_specs=pl.BlockSpec((None, C4, TM), lambda n, t: (n, 0, t))),
        compiler_params=pltpu.CompilerParams(
            dimension_semantics=("parallel", "parallel"),
            vmem_limit_bytes=vmem_limit),
    )(x3, wt, scale, shift)

    # (N, kH*kW*Cout, H*W) -> (N, Cout, 2H, 2W): single remaining XLA transpose.
    y = out3.reshape(N, kH, kW, Cout, H, W)
    y = jnp.transpose(y, (0, 3, 4, 1, 5, 2)).reshape(N, Cout, H * kH, W * kW)
    return y


if __name__ == "__main__":
    key = jax.random.PRNGKey(0)
    N, Cin, Cout, H, W = 2, 4, 8, 16, 16

    kx, kw = jax.random.split(key)
    x = jax.random.normal(kx, (N, Cin, H, W), jnp.float32)

    # Deterministic xavier_uniform-style ConvTranspose2d weight (Cin,Cout,2,2).
    fan_in, fan_out = Cout * 4, Cin * 4
    bound = (6.0 / (fan_in + fan_out)) ** 0.5
    weight = jax.random.uniform(kw, (Cin, Cout, 2, 2), jnp.float32, -bound, bound)

    gamma = jnp.ones((Cout,), jnp.float32)   # init_bn: weight = 1
    beta = jnp.zeros((Cout,), jnp.float32)   # init_bn: bias = 0

    out = jax.jit(deconv_block_5x5)(x, weight, gamma, beta)
    out = jax.block_until_ready(out)

    # Pure-JAX reference (same math, no Pallas) for a correctness check.
    y_ref = jnp.einsum('nchw,cokl->nohkwl', x, weight).reshape(N, Cout, 2 * H, 2 * W)
    y_ref = jnp.maximum(y_ref, 0.0)
    mean = y_ref.mean(axis=(0, 2, 3), keepdims=True)
    var = y_ref.var(axis=(0, 2, 3), keepdims=True)   # biased, like BN training
    ref = (y_ref - mean) / jnp.sqrt(var + EPS)

    assert out.shape == (N, Cout, 2 * H, 2 * W)
    assert out.dtype == jnp.float32
    assert jnp.allclose(out, ref, atol=1e-4, rtol=1e-4), "mismatch vs reference"

    print("KERNEL_OK")
</pallas_src>

<mosaic_0001>
module attributes {stable_mosaic.version = 11 : i64} {
  func.func @_stats_kernel(%arg0: i32, %arg1: i32, %arg2: memref<1x4x256xf32, #tpu.memory_space<vmem>>, %arg3: memref<32x4xf32, #tpu.memory_space<vmem>>, %arg4: memref<1x1x32x1xf32, #tpu.memory_space<vmem>>, %arg5: memref<1x1x32x1xf32, #tpu.memory_space<vmem>>) attributes {dimension_semantics = [#tpu.dimension_semantics<parallel>, #tpu.dimension_semantics<parallel>], iteration_bounds = array<i64: 2, 1>, scalar_prefetch = 0 : i64, scratch_operands = 0 : i64, tpu.core_type = #tpu.core_type<tc>, window_params = [{transform_indices = @transform_0, window_bounds = array<i64: 1, 4, 256>}, {pipeline_mode = #tpu.pipeline_mode<synchronous>, transform_indices = @transform_1, window_bounds = array<i64: 32, 4>}, {transform_indices = @transform_2, window_bounds = array<i64: 1, 1, 32, 1>}, {transform_indices = @transform_3, window_bounds = array<i64: 1, 1, 32, 1>}]} {
    %c0 = arith.constant 0 : index
    %c0_0 = arith.constant 0 : index
    %0 = vector.load %arg3[%c0, %c0_0] : memref<32x4xf32, #tpu.memory_space<vmem>>, vector<32x4xf32>
    %c0_1 = arith.constant 0 : index
    %c0_2 = arith.constant 0 : index
    %c0_3 = arith.constant 0 : index
    %1 = vector.load %arg2[%c0_1, %c0_2, %c0_3] : memref<1x4x256xf32, #tpu.memory_space<vmem>>, vector<1x4x256xf32>
    %2 = vector.shape_cast %1 : vector<1x4x256xf32> to vector<4x256xf32>
    %cst = arith.constant dense<0.000000e+00> : vector<32x256xf32>
    %3 = tpu.matmul %0, %2, %cst {dimension_numbers = #tpu.dot_dimension_numbers<[1], [0], [0], [1], [0, 0, 1, 1], [], []>} : vector<32x4xf32>, vector<4x256xf32>, vector<32x256xf32> -> vector<32x256xf32>
    %cst_4 = arith.constant 0.000000e+00 : f32
    %4 = vector.broadcast %cst_4 : f32 to vector<32x256xf32>
    %5 = arith.maximumf %3, %4 : vector<32x256xf32>
    %cst_5 = arith.constant dense<0.000000e+00> : vector<32xf32>
    %6 = vector.multi_reduction <add>, %5, %cst_5 [1] : vector<32x256xf32> to vector<32xf32>
    %7 = vector.shape_cast %6 : vector<32xf32> to vector<32x1xf32>
    %c0_6 = arith.constant 0 : index
    %c0_7 = arith.constant 0 : index
    %c0_8 = arith.constant 0 : index
    %c0_9 = arith.constant 0 : index
    %8 = vector.load %arg4[%c0_6, %c0_7, %c0_8, %c0_9] : memref<1x1x32x1xf32, #tpu.memory_space<vmem>>, vector<1x1x32x1xf32>
    %9 = vector.shape_cast %8 : vector<1x1x32x1xf32> to vector<32x1xf32>
    %10 = vector.shape_cast %7 : vector<32x1xf32> to vector<1x1x32x1xf32>
    tpu.vector_store %arg4[%c0_6, %c0_7, %c0_8, %c0_9], %10 {strides = array<i32>} : memref<1x1x32x1xf32, #tpu.memory_space<vmem>>, vector<1x1x32x1xf32>,
    %11 = arith.mulf %5, %5 : vector<32x256xf32>
    %cst_10 = arith.constant dense<0.000000e+00> : vector<32xf32>
    %12 = vector.multi_reduction <add>, %11, %cst_10 [1] : vector<32x256xf32> to vector<32xf32>
    %13 = vector.shape_cast %12 : vector<32xf32> to vector<32x1xf32>
    %c0_11 = arith.constant 0 : index
    %c0_12 = arith.constant 0 : index
    %c0_13 = arith.constant 0 : index
    %c0_14 = arith.constant 0 : index
    %14 = vector.load %arg5[%c0_11, %c0_12, %c0_13, %c0_14] : memref<1x1x32x1xf32, #tpu.memory_space<vmem>>, vector<1x1x32x1xf32>
    %15 = vector.shape_cast %14 : vector<1x1x32x1xf32> to vector<32x1xf32>
    %16 = vector.shape_cast %13 : vector<32x1xf32> to vector<1x1x32x1xf32>
    tpu.vector_store %arg5[%c0_11, %c0_12, %c0_13, %c0_14], %16 {strides = array<i32>} : memref<1x1x32x1xf32, #tpu.memory_space<vmem>>, vector<1x1x32x1xf32>,
    return
  }
  func.func @transform_0(%arg0: i32, %arg1: i32) -> (i32, i32, i32) {
    %c0_i32 = arith.constant 0 : i32
    %c0_i32_0 = arith.constant 0 : i32
    return %arg0, %c0_i32, %arg1 : i32, i32, i32
  }
  func.func @transform_1(%arg0: i32, %arg1: i32) -> (i32, i32) {
    %c0_i32 = arith.constant 0 : i32
    %c0_i32_0 = arith.constant 0 : i32
    %c0_i32_1 = arith.constant 0 : i32
    return %c0_i32, %c0_i32_0 : i32, i32
  }
  func.func @transform_2(%arg0: i32, %arg1: i32) -> (i32, i32, i32, i32) {
    %c0_i32 = arith.constant 0 : i32
    %c0_i32_0 = arith.constant 0 : i32
    %c0_i32_1 = arith.constant 0 : i32
    return %arg0, %arg1, %c0_i32, %c0_i32_0 : i32, i32, i32, i32
  }
  func.func @transform_3(%arg0: i32, %arg1: i32) -> (i32, i32, i32, i32) {
    %c0_i32 = arith.constant 0 : i32
    %c0_i32_0 = arith.constant 0 : i32
    %c0_i32_1 = arith.constant 0 : i32
    return %arg0, %arg1, %c0_i32, %c0_i32_0 : i32, i32, i32, i32
  }
}

module attributes {stable_mosaic.version = 11 : i64} {
  func.func @_apply_kernel(%arg0: i32, %arg1: i32, %arg2: memref<1x4x256xf32, #tpu.memory_space<vmem>>, %arg3: memref<32x4xf32, #tpu.memory_space<vmem>>, %arg4: memref<32x1xf32, #tpu.memory_space<vmem>>, %arg5: memref<32x1xf32, #tpu.memory_space<vmem>>, %arg6: memref<1x32x256xf32, #tpu.memory_space<vmem>>) attributes {dimension_semantics = [#tpu.dimension_semantics<parallel>, #tpu.dimension_semantics<parallel>], iteration_bounds = array<i64: 2, 1>, scalar_prefetch = 0 : i64, scratch_operands = 0 : i64, tpu.core_type = #tpu.core_type<tc>, window_params = [{transform_indices = @transform_0, window_bounds = array<i64: 1, 4, 256>}, {pipeline_mode = #tpu.pipeline_mode<synchronous>, transform_indices = @transform_1, window_bounds = array<i64: 32, 4>}, {pipeline_mode = #tpu.pipeline_mode<synchronous>, transform_indices = @transform_2, window_bounds = array<i64: 32, 1>}, {pipeline_mode = #tpu.pipeline_mode<synchronous>, transform_indices = @transform_3, window_bounds = array<i64: 32, 1>}, {transform_indices = @transform_4, window_bounds = array<i64: 1, 32, 256>}]} {
    %c0 = arith.constant 0 : index
    %c0_0 = arith.constant 0 : index
    %0 = vector.load %arg3[%c0, %c0_0] : memref<32x4xf32, #tpu.memory_space<vmem>>, vector<32x4xf32>
    %c0_1 = arith.constant 0 : index
    %c0_2 = arith.constant 0 : index
    %c0_3 = arith.constant 0 : index
    %1 = vector.load %arg2[%c0_1, %c0_2, %c0_3] : memref<1x4x256xf32, #tpu.memory_space<vmem>>, vector<1x4x256xf32>
    %2 = vector.shape_cast %1 : vector<1x4x256xf32> to vector<4x256xf32>
    %cst = arith.constant dense<0.000000e+00> : vector<32x256xf32>
    %3 = tpu.matmul %0, %2, %cst {dimension_numbers = #tpu.dot_dimension_numbers<[1], [0], [0], [1], [0, 0, 1, 1], [], []>} : vector<32x4xf32>, vector<4x256xf32>, vector<32x256xf32> -> vector<32x256xf32>
    %cst_4 = arith.constant 0.000000e+00 : f32
    %4 = vector.broadcast %cst_4 : f32 to vector<32x256xf32>
    %5 = arith.maximumf %3, %4 : vector<32x256xf32>
    %c0_5 = arith.constant 0 : index
    %c0_6 = arith.constant 0 : index
    %6 = vector.load %arg4[%c0_5, %c0_6] : memref<32x1xf32, #tpu.memory_space<vmem>>, vector<32x1xf32>
    %7 = vector.broadcast %6 : vector<32x1xf32> to vector<32x256xf32>
    %8 = arith.mulf %5, %7 : vector<32x256xf32>
    %c0_7 = arith.constant 0 : index
    %c0_8 = arith.constant 0 : index
    %9 = vector.load %arg5[%c0_7, %c0_8] : memref<32x1xf32, #tpu.memory_space<vmem>>, vector<32x1xf32>
    %10 = vector.broadcast %9 : vector<32x1xf32> to vector<32x256xf32>
    %11 = arith.addf %8, %10 : vector<32x256xf32>
    %c0_9 = arith.constant 0 : index
    %c0_10 = arith.constant 0 : index
    %c0_11 = arith.constant 0 : index
    %12 = vector.load %arg6[%c0_9, %c0_10, %c0_11] : memref<1x32x256xf32, #tpu.memory_space<vmem>>, vector<1x32x256xf32>
    %13 = vector.shape_cast %12 : vector<1x32x256xf32> to vector<32x256xf32>
    %14 = vector.shape_cast %11 : vector<32x256xf32> to vector<1x32x256xf32>
    tpu.vector_store %arg6[%c0_9, %c0_10, %c0_11], %14 {strides = array<i32>} : memref<1x32x256xf32, #tpu.memory_space<vmem>>, vector<1x32x256xf32>,
    return
  }
  func.func @transform_0(%arg0: i32, %arg1: i32) -> (i32, i32, i32) {
    %c0_i32 = arith.constant 0 : i32
    %c0_i32_0 = arith.constant 0 : i32
    return %arg0, %c0_i32, %arg1 : i32, i32, i32
  }
  func.func @transform_1(%arg0: i32, %arg1: i32) -> (i32, i32) {
    %c0_i32 = arith.constant 0 : i32
    %c0_i32_0 = arith.constant 0 : i32
    %c0_i32_1 = arith.constant 0 : i32
    return %c0_i32, %c0_i32_0 : i32, i32
  }
  func.func @transform_2(%arg0: i32, %arg1: i32) -> (i32, i32) {
    %c0_i32 = arith.constant 0 : i32
    %c0_i32_0 = arith.constant 0 : i32
    %c0_i32_1 = arith.constant 0 : i32
    return %c0_i32, %c0_i32_0 : i32, i32
  }
  func.func @transform_3(%arg0: i32, %arg1: i32) -> (i32, i32) {
    %c0_i32 = arith.constant 0 : i32
    %c0_i32_0 = arith.constant 0 : i32
    %c0_i32_1 = arith.constant 0 : i32
    return %c0_i32, %c0_i32_0 : i32, i32
  }
  func.func @transform_4(%arg0: i32, %arg1: i32) -> (i32, i32, i32) {
    %c0_i32 = arith.constant 0 : i32
    %c0_i32_0 = arith.constant 0 : i32
    return %arg0, %c0_i32, %arg1 : i32, i32, i32
  }
}

</mosaic_0001>

<llo_original>
// kernel: tile.0
$region0: #{tile.0}
  %s0 = inlined_call_operand.vmem [shape: f32[4,8], index: 0, kind: input, shape index: {}]
  %s1 = inlined_call_operand.vmem [shape: f32[32,1], index: 1, kind: output, shape index: {}]
  $region1: #{tile.0} parent=0
    #allocation0 [shape = 'u8[4096]{0}', space=vmem, size = 0x1000, scoped, tag = 'scoped mem for input reshape']
    %s3 = ssub.s32 16, 1
    %v4 = vld [vmem:[%s0] sm:%s3]
    %5 = vst [vmem:[#allocation0] sm:%s3] %v4
    %v6 = vld [vmem:[#allocation0] sm:$0xf]
    %vm7 = vcmask 7168
    %8 = vst.msk [vmem:[%s1] ss:$8 sm:$0xf] %vm7, %v6
    %v9 = vld [vmem:[#allocation0] sm:$0xf]
    %10 = vrot.lane.b32.xlu0 %v9, 127
    %v11 = vpop.permute.xlu0 %10
    %vm12 = vcmask 7168
    %s13 = scalar_lea.vmem %s1, 1
    %14 = vst.msk [vmem:[%s13] ss:$8 sm:$0xf] %vm12, %v11
    %v15 = vld [vmem:[#allocation0] sm:$0xf]
    %16 = vrot.lane.b32.xlu0 %v15, 126
    %v17 = vpop.permute.xlu0 %16
    %vm18 = vcmask 7168
    %s19 = scalar_lea.vmem %s1, 2
    %20 = vst.msk [vmem:[%s19] ss:$8 sm:$0xf] %vm18, %v17
    %v21 = vld [vmem:[#allocation0] sm:$0xf]
    %22 = vrot.lane.b32.xlu0 %v21, 125
    %v23 = vpop.permute.xlu0 %22
    %vm24 = vcmask 7168
    %s25 = scalar_lea.vmem %s1, 3
    %26 = vst.msk [vmem:[%s25] ss:$8 sm:$0xf] %vm24, %v23
    %v27 = vld [vmem:[#allocation0] sm:$0xf]
    %28 = vrot.lane.b32.xlu0 %v27, 124
    %v29 = vpop.permute.xlu0 %28
    %vm30 = vcmask 7168
    %s31 = scalar_lea.vmem %s1, 4
    %32 = vst.msk [vmem:[%s31] ss:$8 sm:$0xf] %vm30, %v29
    %v33 = vld [vmem:[#allocation0] sm:$0xf]
    %34 = vrot.lane.b32.xlu0 %v33, 123
    %v35 = vpop.permute.xlu0 %34
    %vm36 = vcmask 7168
    %s37 = scalar_lea.vmem %s1, 5
    %38 = vst.msk [vmem:[%s37] ss:$8 sm:$0xf] %vm36, %v35
    %v39 = vld [vmem:[#allocation0] sm:$0xf]
    %40 = vrot.lane.b32.xlu0 %v39, 122
    %v41 = vpop.permute.xlu0 %40
    %vm42 = vcmask 7168
    %s43 = scalar_lea.vmem %s1, 6
    %44 = vst.msk [vmem:[%s43] ss:$8 sm:$0xf] %vm42, %v41
    %v45 = vld [vmem:[#allocation0] sm:$0xf]
    %46 = vrot.lane.b32.xlu0 %v45, 121
    %v47 = vpop.permute.xlu0 %46
    %vm48 = vcmask 7168
    %s49 = scalar_lea.vmem %s1, 7
    %50 = vst.msk [vmem:[%s49] ss:$8 sm:$0xf] %vm48, %v47

// kernel: tile.18
$region0: #{tile.18}
  #allocation0 [shape = 's32[1]{0}', space=sflag, size = 0x4, scoped, tag = 'scoped memory for tile.18']
  %s0 = inlined_call_operand.vmem [shape: f32[8], index: 0, kind: input, shape index: {}]
  %s1 = inlined_call_operand.vmem [shape: f32[4,8], index: 1, kind: output, shape index: {}]
  // Predicated region
  $region2: #{tile.18} parent=0 // pred_check
    _
  $region3: #{tile.18} parent=0 // pred_check_branch
    %3 = sbr.rel (0) target = $region5
  $region4: #{tile.18} parent=0 // pred_region
    _
  $region5: #{tile.18} parent=0 // pred_fallthru
    _
  %v4 = vld [vmem:[%s0] ss:$0 sm:$0xff]
  %5 = vst [vmem:[%s1] sm:$0xf] %v4

// kernel: deconv_block_5x5.2
$region0: #{deconv_block_5x5.2}
  #allocation0 [shape = 'u32[]', space=smem, size = 0x4, offset = 0x4, fixed_abs, tag = 'smem constant byte address 0x4 - core index']
  #allocation1 [shape = 'u32[72,128]{1,0:T(1,128)}', space=vmem, size = 0x9000, scoped, tag = 'internal scratch']
  %s0 = inlined_call_operand.vmem [shape: f32[2,4,256], index: 0, kind: input, shape index: {}]
  %s1 = inlined_call_operand.vmem [shape: f32[32,4], index: 1, kind: input, shape index: {}]
  %s2 = inlined_call_operand.vmem [shape: f32[2,1,32,1], index: 2, kind: output, shape index: {0}]
  %s3 = inlined_call_operand.vmem [shape: f32[2,1,32,1], index: 3, kind: output, shape index: {1}]
  %4 = xla_tuple %s2, %s3
  %s5 = sld [smem:[#allocation0]]
  $region49: #{deconv_block_5x5.2} parent=0
    _
  %s7 = ssub.s32 1, %s5
  %s8 = scalar_select 0, %s7, %s5
  loop: start=0, step=1, limit=4
  $region2: #{deconv_block_5x5.2} parent=0 // loop_pre_header
    _
  $region3: #{deconv_block_5x5.2} parent=0 // loop_header
    %s10 = sphi 0, %s14
    %p11 = scmp.ge.s32.totalorder %s10, 4
    %s17 = sphi 0, %s29
    %s18 = sphi 0, %s25
    %s19 = sphi 0, %s17
    %s20 = sphi 0, %s18
    %s21 = sphi 0, %s19
    %s22 = sphi 0, %s20
    %s34 = sphi 0, %s36
    %s37 = sphi 0, %s34
    %s38 = sphi 0, %s37
    %s54 = sphi 0, %s38
    %s58 = sphi 0, %s58
    %s60 = sphi 0, %s58
    %s61 = sphi 0, %s60
    %s75 = sphi 0, %s61
    %s83 = sphi 0, %s85
    %s86 = sphi 0, %s83
    %s87 = sphi 0, %s86
    %s103 = sphi 0, %s87
    %s111 = sphi 0, %s113
    %s114 = sphi 0, %s111
    %s115 = sphi 0, %s114
    %s131 = sphi 0, %s115
  $region4: #{deconv_block_5x5.2} parent=0 // loop_header_branch
    %13 = sbr.rel (%p11) target = $region8
  $region5: #{deconv_block_5x5.2} parent=0 // loop_body
    %s15 = ssub.s32 %s10, 1
    %s16 = ssub.s32 %s10, 2
    %s23 = sadd.s32 1, %s18
    %p24 = scmp.ge.s32.totalorder %s23, 1
    %s25 = scalar_select %p24, 0, %s23
    %s26 = sadd.s32 1, %s17
    %s27 = scalar_select %p24, %s26, %s17
    %p28 = scmp.ge.s32.totalorder %s27, 2
    %s29 = scalar_select %p28, 0, %s27
    %s30 = ssub.s32 %s17, %s29
    %s31 = ssub.s32 %s18, %s25
    %s32 = sor.u32 %s30, %s31
    %p33 = scmp.eq.s32.totalorder %s32, 0
    %s35 = sadd.s32 %s34, 1
    %s36 = scalar_select %p33, %s34, %s35
    %p39 = pneg %p33
    %p40 = scmp.eq.s32.totalorder %s10, 1
    %p41 = por %p39, %p40
    %p42 = scmp.ne.s32.totalorder %s34, %s37
    %p43 = scmp.eq.s32.totalorder %s10, 0
    %p44 = por %p42, %p43
    %p45 = scmp.ne.s32.totalorder %s34, %s37
    %p46 = scmp.eq.s32.totalorder %s15, 1
    %p47 = por %p45, %p46
    %p48 = scmp.ne.s32.totalorder %s37, %s38
    %p49 = scmp.eq.s32.totalorder %s15, 0
    %p50 = por %p48, %p49
    %p51 = scmp.ne.s32.totalorder %s37, %s38
    %p52 = scmp.eq.s32.totalorder %s16, 1
    %p53 = por %p51, %p52
    %p55 = scmp.ne.s32.totalorder %s38, %s54
    %p56 = scmp.eq.s32.totalorder %s16, 0
    %p57 = por %p55, %p56
    %s59 = sadd.s32 %s58, 1
    %p62 = scmp.eq.s32.totalorder %s10, 1
    %p63 = scmp.ne.s32.totalorder %s58, %s60
    %p64 = scmp.eq.s32.totalorder %s10, 0
    %p65 = por %p63, %p64
    %p66 = scmp.ne.s32.totalorder %s58, %s60
    %p67 = scmp.eq.s32.totalorder %s15, 1
    %p68 = por %p66, %p67
    %p69 = scmp.ne.s32.totalorder %s60, %s61
    %p70 = scmp.eq.s32.totalorder %s15, 0
    %p71 = por %p69, %p70
    %p72 = scmp.ne.s32.totalorder %s60, %s61
    %p73 = scmp.eq.s32.totalorder %s16, 1
    %p74 = por %p72, %p73
    %p76 = scmp.ne.s32.totalorder %s61, %s75
    %p77 = scmp.eq.s32.totalorder %s16, 0
    %p78 = por %p76, %p77
    %s79 = ssub.s32 %s17, %s29
    %s80 = ssub.s32 %s18, %s25
    %s81 = sor.u32 %s79, %s80
    %p82 = scmp.eq.s32.totalorder %s81, 0
    %s84 = sadd.s32 %s83, 1
    %s85 = scalar_select %p82, %s83, %s84
    %p88 = pneg %p82
    %p89 = scmp.eq.s32.totalorder %s10, 1
    %p90 = por %p88, %p89
    %p91 = scmp.ne.s32.totalorder %s83, %s86
    %p92 = scmp.eq.s32.totalorder %s10, 0
    %p93 = por %p91, %p92
    %p94 = scmp.ne.s32.totalorder %s83, %s86
    %p95 = scmp.eq.s32.totalorder %s15, 1
    %p96 = por %p94, %p95
    %p97 = scmp.ne.s32.totalorder %s86, %s87
    %p98 = scmp.eq.s32.totalorder %s15, 0
    %p99 = por %p97, %p98
    %p100 = scmp.ne.s32.totalorder %s86, %s87
    %p101 = scmp.eq.s32.totalorder %s16, 1
    %p102 = por %p100, %p101
    %p104 = scmp.ne.s32.totalorder %s87, %s103
    %p105 = scmp.eq.s32.totalorder %s16, 0
    %p106 = por %p104, %p105
    %s107 = ssub.s32 %s17, %s29
    %s108 = ssub.s32 %s18, %s25
    %s109 = sor.u32 %s107, %s108
    %p110 = scmp.eq.s32.totalorder %s109, 0
    %s112 = sadd.s32 %s111, 1
    %s113 = scalar_select %p110, %s111, %s112
    %p116 = pneg %p110
    %p117 = scmp.eq.s32.totalorder %s10, 1
    %p118 = por %p116, %p117
    %p119 = scmp.ne.s32.totalorder %s111, %s114
    %p120 = scmp.eq.s32.totalorder %s10, 0
    %p121 = por %p119, %p120
    %p122 = scmp.ne.s32.totalorder %s111, %s114
    %p123 = scmp.eq.s32.totalorder %s15, 1
    %p124 = por %p122, %p123
    %p125 = scmp.ne.s32.totalorder %s114, %s115
    %p126 = scmp.eq.s32.totalorder %s15, 0
    %p127 = por %p125, %p126
    %p128 = scmp.ne.s32.totalorder %s114, %s115
    %p129 = scmp.eq.s32.totalorder %s16, 1
    %p130 = por %p128, %p129
    %p132 = scmp.ne.s32.totalorder %s115, %s131
    %p133 = scmp.eq.s32.totalorder %s16, 0
    %p134 = por %p132, %p133
    %p135 = scmp.le.s32.totalorder 1, %s10
    %p136 = scmp.lt.s32.totalorder %s10, 3
    %p137 = pnand %p135, %p136
    %p138 = pneg %p137
    // Predicated region
    $region9: #{deconv_block_5x5.2} parent=5 // pred_check
      _
    $region10: #{deconv_block_5x5.2} parent=5 // pred_check_branch
      %140 = sbr.rel (%p137) target = $region12
    $region11: #{deconv_block_5x5.2} parent=5 // pred_region
      %s141 = ssub.s32 %s10, 1
      // Predicated region
      $region13: #{deconv_block_5x5.2} parent=11 // pred_check
        %p142 = pneg %p71
      $region14: #{deconv_block_5x5.2} parent=11 // pred_check_branch
        %144 = sbr.rel (%p142) target = $region16
      $region15: #{deconv_block_5x5.2} parent=11 // pred_region
        _
      $region16: #{deconv_block_5x5.2} parent=11 // pred_fallthru
        _
    $region12: #{deconv_block_5x5.2} parent=5 // pred_fallthru
      _
    %p145 = scmp.lt.s32.totalorder %s10, 2
    // Predicated region
    $region17: #{deconv_block_5x5.2} parent=5 // pred_check
      %p146 = pneg %p145
    $region18: #{deconv_block_5x5.2} parent=5 // pred_check_branch
      %148 = sbr.rel (%p146) target = $region20
    $region19: #{deconv_block_5x5.2} parent=5 // pred_region
      // Predicated region
      $region21: #{deconv_block_5x5.2} parent=19 // pred_check
        %p149 = pneg %p44
      $region22: #{deconv_block_5x5.2} parent=19 // pred_check_branch
        %151 = sbr.rel (%p149) target = $region24
      $region23: #{deconv_block_5x5.2} parent=19 // pred_region
        %s152 = smul.u32 2, %s18
        %p153 = scmp.lt.s32.totalorder %s17, 1
        %s154 = scalar_select %p153, %s17, 1
        %p155 = scmp.lt.s32.totalorder %s152, 1
        %s156 = scalar_select %p155, %s152, 1
        %s157 = smul.addr %s154, 2
        %s158 = sadd.s32 %s156, %s157
        %s159 = smul.addr %s158, 4
        %s160 = scalar_lea.vmem %s0, %s159
        %s161 = smul.u32 2, %s18
      $region24: #{deconv_block_5x5.2} parent=19 // pred_fallthru
        _
    $region20: #{deconv_block_5x5.2} parent=5 // pred_fallthru
      _
    %p162 = scmp.le.s32.totalorder 1, %s10
    %p163 = scmp.lt.s32.totalorder %s10, 3
    %p164 = pnand %p162, %p163
    %p165 = pneg %p164
    // Predicated region
    $region25: #{deconv_block_5x5.2} parent=5 // pred_check
      _
    $region26: #{deconv_block_5x5.2} parent=5 // pred_check_branch
      %167 = sbr.rel (%p164) target = $region28
    $region27: #{deconv_block_5x5.2} parent=5 // pred_region
      %s168 = ssub.s32 %s10, 1
      %s169 = smul.u32 2, %s20
      %p170 = scmp.lt.s32.totalorder %s19, 1
      %s171 = scalar_select %p170, %s19, 1
      %p172 = scmp.lt.s32.totalorder %s169, 1
      %s173 = scalar_select %p172, %s169, 1
      %s174 = smul.addr %s171, 2
      %s175 = sadd.s32 %s173, %s174
      %s176 = smul.addr %s175, 4
      %s177 = scalar_lea.vmem %s0, %s176
      %p178 = pneg %p50
      %p179 = pneg %p47
      %p180 = pneg %p71
      %p181 = pneg %p68
      %p182 = pneg %p99
      %p183 = pneg %p96
      %p184 = scmp.lt.s32.totalorder %s19, 1
      %s185 = scalar_select %p184, %s19, 1
      %p186 = scmp.lt.s32.totalorder %s20, 0
      %s187 = scalar_select %p186, %s20, 0
      %s188 = smul.addr %s187, 4
      %s189 = smul.addr %s185, 4
      %s190 = sadd.s32 %s188, %s189
      %s191 = smul.addr %s190, 8
      %s192 = scalar_lea.vmem %s2, %s191
      %p193 = pneg %p127
      %p194 = pneg %p124
      %p195 = scmp.lt.s32.totalorder %s19, 1
      %s196 = scalar_select %p195, %s19, 1
      %p197 = scmp.lt.s32.totalorder %s20, 0
      %s198 = scalar_select %p197, %s20, 0
      %s199 = smul.addr %s198, 4
      %s200 = smul.addr %s196, 4
      %s201 = sadd.s32 %s199, %s200
      %s202 = smul.addr %s201, 8
      %s203 = scalar_lea.vmem %s3, %s202
      %s204 = smul.u32 2, %s20
      %p205 = scmp.lt.s32.totalorder %s19, 1
      %s206 = scalar_select %p205, %s19, 1
      %p207 = scmp.lt.s32.totalorder %s204, 1
      %s208 = scalar_select %p207, %s204, 1
      %s209 = smul.addr %s206, 2
      %s210 = sadd.s32 %s208, %s209
      %s211 = smul.addr %s210, 4
      %s212 = scalar_lea.vmem %s0, %s211
      %s213 = smul.u32 2, %s20
      %p214 = scmp.lt.s32.totalorder %s19, 1
      %s215 = scalar_select %p214, %s19, 1
      %p216 = scmp.lt.s32.totalorder %s20, 0
      %s217 = scalar_select %p216, %s20, 0
      %s218 = smul.addr %s217, 4
      %s219 = smul.addr %s215, 4
      %s220 = sadd.s32 %s218, %s219
      %s221 = smul.addr %s220, 8
      %s222 = scalar_lea.vmem %s2, %s221
      %p223 = scmp.lt.s32.totalorder %s19, 1
      %s224 = scalar_select %p223, %s19, 1
      %p225 = scmp.lt.s32.totalorder %s20, 0
      %s226 = scalar_select %p225, %s20, 0
      %s227 = smul.addr %s226, 4
      %s228 = smul.addr %s224, 4
      %s229 = sadd.s32 %s227, %s228
      %s230 = smul.addr %s229, 8
      %s231 = scalar_lea.vmem %s3, %s230
      %v232 = vld [vmem:[%s1] sm:$0xff]
      %v233 = vld [vmem:[%s1 + $0x8] sm:$0xff]
      %v234 = vld [vmem:[%s1 + $0x10] sm:$0xff]
      %v235 = vld [vmem:[%s1 + $0x18] sm:$0xff]
      %v236 = vld [vmem:[%s212] sm:$0xff]
      %238 = vst [vmem:[#allocation1] ss:$2 sm:$0xff] %v236
      %v239 = vld.sshfl [vmem:[#allocation1] sm:$0xff pattern:$0x75316420]
      %v240 = vld.sshfl [vmem:[#allocation1 + $0x8] sm:$0xff pattern:$0x75316420]
      %vm241 = vcmask 31744
      %v243 = vsel %vm241, %v232, 0
      %v246 = vsel %vm241, %v233, 0
      %v249 = vsel %vm241, %v234, 0
      %v252 = vsel %vm241, %v235, 0
      %vm254 = vcmask 1043456
      %v255 = vsel %vm254, %v239, 0
      %v257 = vsel %vm254, %v240, 0
      %259 = vmatpush.msra.mxu0 0.0
      %260 = vmatpush.msra.mxu0 0.0
      %261 = vmatpush.msra.mxu0 0.0
      %262 = vmatpush.msra.mxu0 0.0
      %263 = vmatpush.msra.mxu0 0.0
      %264 = vmatpush.msra.mxu0 0.0
      %265 = vmatpush.msra.mxu0 0.0
      %266 = vmatpush.msra.mxu0 0.0
      %267 = vmatpush.msra.mxu0 0.0
      %268 = vmatpush.msra.mxu0 0.0
      %269 = vmatpush.msra.mxu0 0.0
      %270 = vmatpush.msra.mxu0 0.0
      %271 = vmatpush.msra.mxu0 0.0
      %272 = vmatpush.msra.mxu0 0.0
      %273 = vmatpush.msra.mxu0 0.0
      %274 = vmatpush.msra.mxu0 %v255
      %275 = vmatmul.f32.gmra.mxu0 %v243
      %v276 = vpop.f32.mrf.mxu0
      %v277 = vadd.f32 0.0, %v276
      %278 = vmatmul.f32.gmra.mxu0 %v246
      %v279 = vpop.f32.mrf.mxu0
      %v280 = vadd.f32 0.0, %v279
      %281 = vmatmul.f32.gmra.mxu0 %v249
      %v282 = vpop.f32.mrf.mxu0
      %v283 = vadd.f32 0.0, %v282
      %284 = vmatmul.f32.gmra.mxu0 %v252
      %v285 = vpop.f32.mrf.mxu0
      %v286 = vadd.f32 0.0, %v285
      %287 = vdwg.mxu0
      %288 = vmatpush.msra.mxu0 0.0
      %289 = vmatpush.msra.mxu0 0.0
      %290 = vmatpush.msra.mxu0 0.0
      %291 = vmatpush.msra.mxu0 0.0
      %292 = vmatpush.msra.mxu0 0.0
      %293 = vmatpush.msra.mxu0 0.0
      %294 = vmatpush.msra.mxu0 0.0
      %295 = vmatpush.msra.mxu0 0.0
      %296 = vmatpush.msra.mxu0 0.0
      %297 = vmatpush.msra.mxu0 0.0
      %298 = vmatpush.msra.mxu0 0.0
      %299 = vmatpush.msra.mxu0 0.0
      %300 = vmatpush.msra.mxu0 0.0
      %301 = vmatpush.msra.mxu0 0.0
      %302 = vmatpush.msra.mxu0 0.0
      %303 = vmatpush.msra.mxu0 %v257
      %304 = vmatmul.f32.gmra.mxu0 %v243
      %v305 = vpop.f32.mrf.mxu0
      %v306 = vadd.f32 0.0, %v305
      %307 = vmatmul.f32.gmra.mxu0 %v246
      %v308 = vpop.f32.mrf.mxu0
      %v309 = vadd.f32 0.0, %v308
      %310 = vmatmul.f32.gmra.mxu0 %v249
      %v311 = vpop.f32.mrf.mxu0
      %v312 = vadd.f32 0.0, %v311
      %313 = vmatmul.f32.gmra.mxu0 %v252
      %v314 = vpop.f32.mrf.mxu0
      %v315 = vadd.f32 0.0, %v314
      %316 = vdwg.mxu0
      %v317 = vmax.f32 %v277, 0.0
      %v318 = vmax.f32 %v306, 0.0
      %v319 = vmax.f32 %v280, 0.0
      %v320 = vmax.f32 %v309, 0.0
      %v321 = vmax.f32 %v283, 0.0
      %v322 = vmax.f32 %v312, 0.0
      %v323 = vmax.f32 %v286, 0.0
      %v324 = vmax.f32 %v315, 0.0
      %v325 = vadd.f32 %v317, %v318
      %326 = vadd.xlane.f32.xlu0 %v325
      %v327 = vpop.xlane.xlu0 %326
      %v328 = vadd.f32 %v319, %v320
      %329 = vadd.xlane.f32.xlu0 %v328
      %v330 = vpop.xlane.xlu0 %329
      %v331 = vadd.f32 %v321, %v322
      %332 = vadd.xlane.f32.xlu0 %v331
      %v333 = vpop.xlane.xlu0 %332
      %v334 = vadd.f32 %v323, %v324
      %335 = vadd.xlane.f32.xlu0 %v334
      %v336 = vpop.xlane.xlu0 %335
      %vm337 = vcmask 7168
      %338 = vst.msk [vmem:[%s222] sm:$0xff] %vm337, %v327
      %339 = vst.msk [vmem:[%s222 + $0x8] sm:$0xff] %vm337, %v330
      %340 = vst.msk [vmem:[%s222 + $0x10] sm:$0xff] %vm337, %v333
      %341 = vst.msk [vmem:[%s222 + $0x18] sm:$0xff] %vm337, %v336
      %v342 = vmul.f32 %v317, %v317
      %v343 = vmul.f32 %v318, %v318
      %v344 = vmul.f32 %v319, %v319
      %v345 = vmul.f32 %v320, %v320
      %v346 = vmul.f32 %v321, %v321
      %v347 = vmul.f32 %v322, %v322
      %v348 = vmul.f32 %v323, %v323
      %v349 = vmul.f32 %v324, %v324
      %v350 = vadd.f32 %v342, %v343
      %351 = vadd.xlane.f32.xlu0 %v350
      %v352 = vpop.xlane.xlu0 %351
      %v353 = vadd.f32 %v344, %v345
      %354 = vadd.xlane.f32.xlu0 %v353
      %v355 = vpop.xlane.xlu0 %354
      %v356 = vadd.f32 %v346, %v347
      %357 = vadd.xlane.f32.xlu0 %v356
      %v358 = vpop.xlane.xlu0 %357
      %v359 = vadd.f32 %v348, %v349
      %360 = vadd.xlane.f32.xlu0 %v359
      %v361 = vpop.xlane.xlu0 %360
      %362 = vst.msk [vmem:[%s231] sm:$0xff] %vm337, %v352
      %363 = vst.msk [vmem:[%s231 + $0x8] sm:$0xff] %vm337, %v355
      %364 = vst.msk [vmem:[%s231 + $0x10] sm:$0xff] %vm337, %v358
      %365 = vst.msk [vmem:[%s231 + $0x18] sm:$0xff] %vm337, %v361
      %p366 = scmp.lt.s32.totalorder %s19, 1
      %s367 = scalar_select %p366, %s19, 1
      %p368 = scmp.lt.s32.totalorder %s20, 0
      %s369 = scalar_select %p368, %s20, 0
      %s370 = smul.addr %s369, 4
      %s371 = smul.addr %s367, 4
      %s372 = sadd.s32 %s370, %s371
      %s373 = smul.addr %s372, 8
      %s374 = scalar_lea.vmem %s2, %s373
      %p375 = scmp.lt.s32.totalorder %s19, 1
      %s376 = scalar_select %p375, %s19, 1
      %p377 = scmp.lt.s32.totalorder %s20, 0
      %s378 = scalar_select %p377, %s20, 0
      %s379 = smul.addr %s378, 4
      %s380 = smul.addr %s376, 4
      %s381 = sadd.s32 %s379, %s380
      %s382 = smul.addr %s381, 8
      %s383 = scalar_lea.vmem %s3, %s382
      // Predicated region
      $region29: #{deconv_block_5x5.2} parent=27 // pred_check
        %p384 = pneg %p96
      $region30: #{deconv_block_5x5.2} parent=27 // pred_check_branch
        %386 = sbr.rel (%p384) target = $region32
      $region31: #{deconv_block_5x5.2} parent=27 // pred_region
        _
      $region32: #{deconv_block_5x5.2} parent=27 // pred_fallthru
        _
      // Predicated region
      $region33: #{deconv_block_5x5.2} parent=27 // pred_check
        %p387 = pneg %p124
      $region34: #{deconv_block_5x5.2} parent=27 // pred_check_branch
        %389 = sbr.rel (%p387) target = $region36
      $region35: #{deconv_block_5x5.2} parent=27 // pred_region
        _
      $region36: #{deconv_block_5x5.2} parent=27 // pred_fallthru
        _
    $region28: #{deconv_block_5x5.2} parent=5 // pred_fallthru
      _
    %p390 = scmp.le.s32.totalorder 2, %s10
    // Predicated region
    $region37: #{deconv_block_5x5.2} parent=5 // pred_check
      %p391 = pneg %p390
    $region38: #{deconv_block_5x5.2} parent=5 // pred_check_branch
      %393 = sbr.rel (%p391) target = $region40
    $region39: #{deconv_block_5x5.2} parent=5 // pred_region
      %s394 = ssub.s32 %s10, 2
      // Predicated region
      $region41: #{deconv_block_5x5.2} parent=39 // pred_check
        %p395 = pneg %p102
      $region42: #{deconv_block_5x5.2} parent=39 // pred_check_branch
        %397 = sbr.rel (%p395) target = $region44
      $region43: #{deconv_block_5x5.2} parent=39 // pred_region
        %p398 = scmp.lt.s32.totalorder %s21, 1
        %s399 = scalar_select %p398, %s21, 1
        %p400 = scmp.lt.s32.totalorder %s22, 0
        %s401 = scalar_select %p400, %s22, 0
        %s402 = smul.addr %s401, 4
        %s403 = smul.addr %s399, 4
        %s404 = sadd.s32 %s402, %s403
        %s405 = smul.addr %s404, 8
        %s406 = scalar_lea.vmem %s2, %s405
      $region44: #{deconv_block_5x5.2} parent=39 // pred_fallthru
        _
      // Predicated region
      $region45: #{deconv_block_5x5.2} parent=39 // pred_check
        %p407 = pneg %p130
      $region46: #{deconv_block_5x5.2} parent=39 // pred_check_branch
        %409 = sbr.rel (%p407) target = $region48
      $region47: #{deconv_block_5x5.2} parent=39 // pred_region
        %p410 = scmp.lt.s32.totalorder %s21, 1
        %s411 = scalar_select %p410, %s21, 1
        %p412 = scmp.lt.s32.totalorder %s22, 0
        %s413 = scalar_select %p412, %s22, 0
        %s414 = smul.addr %s413, 4
        %s415 = smul.addr %s411, 4
        %s416 = sadd.s32 %s414, %s415
        %s417 = smul.addr %s416, 8
        %s418 = scalar_lea.vmem %s3, %s417
      $region48: #{deconv_block_5x5.2} parent=39 // pred_fallthru
        _
    $region40: #{deconv_block_5x5.2} parent=5 // pred_fallthru
      _
  $region6: #{deconv_block_5x5.2} parent=0 // loop_footer
    %s14 = sadd.s32 1, %s10
  $region7: #{deconv_block_5x5.2} parent=0 // loop_footer_branch
    %9 = sbr.rel target = $region3
  $region8: #{deconv_block_5x5.2} parent=0 // loop_exit
    _

// kernel: deconv_block_5x5.3
$region0: #{deconv_block_5x5.3}
  #allocation0 [shape = 'u32[]', space=smem, size = 0x4, offset = 0x4, fixed_abs, tag = 'smem constant byte address 0x4 - core index']
  #allocation1 [shape = 'u32[72,128]{1,0:T(1,128)}', space=vmem, size = 0x9000, scoped, tag = 'internal scratch']
  %s0 = inlined_call_operand.vmem [shape: f32[2,4,256], index: 0, kind: input, shape index: {}]
  %s1 = inlined_call_operand.vmem [shape: f32[32,4], index: 1, kind: input, shape index: {}]
  %s2 = inlined_call_operand.vmem [shape: f32[32,1], index: 2, kind: input, shape index: {}]
  %s3 = inlined_call_operand.vmem [shape: f32[32,1], index: 3, kind: input, shape index: {}]
  %s4 = inlined_call_operand.vmem [shape: f32[2,32,256], index: 4, kind: output, shape index: {}]
  %s5 = sld [smem:[#allocation0]]
  $region49: #{deconv_block_5x5.3} parent=0
    _
  %s7 = ssub.s32 1, %s5
  %s8 = scalar_select 0, %s7, %s5
  loop: start=0, step=1, limit=4
  $region2: #{deconv_block_5x5.3} parent=0 // loop_pre_header
    _
  $region3: #{deconv_block_5x5.3} parent=0 // loop_header
    %s10 = sphi 0, %s14
    %p11 = scmp.ge.s32.totalorder %s10, 4
    %s17 = sphi 0, %s29
    %s18 = sphi 0, %s25
    %s19 = sphi 0, %s17
    %s20 = sphi 0, %s18
    %s21 = sphi 0, %s19
    %s22 = sphi 0, %s20
    %s34 = sphi 0, %s36
    %s37 = sphi 0, %s34
    %s38 = sphi 0, %s37
    %s54 = sphi 0, %s38
    %s58 = sphi 0, %s58
    %s60 = sphi 0, %s58
    %s61 = sphi 0, %s60
    %s75 = sphi 0, %s61
    %s79 = sphi 0, %s79
    %s81 = sphi 0, %s79
    %s82 = sphi 0, %s81
    %s96 = sphi 0, %s82
    %s100 = sphi 0, %s100
    %s102 = sphi 0, %s100
    %s103 = sphi 0, %s102
    %s117 = sphi 0, %s103
    %s125 = sphi 0, %s127
    %s128 = sphi 0, %s125
    %s129 = sphi 0, %s128
    %s145 = sphi 0, %s129
  $region4: #{deconv_block_5x5.3} parent=0 // loop_header_branch
    %13 = sbr.rel (%p11) target = $region8
  $region5: #{deconv_block_5x5.3} parent=0 // loop_body
    %s15 = ssub.s32 %s10, 1
    %s16 = ssub.s32 %s10, 2
    %s23 = sadd.s32 1, %s18
    %p24 = scmp.ge.s32.totalorder %s23, 1
    %s25 = scalar_select %p24, 0, %s23
    %s26 = sadd.s32 1, %s17
    %s27 = scalar_select %p24, %s26, %s17
    %p28 = scmp.ge.s32.totalorder %s27, 2
    %s29 = scalar_select %p28, 0, %s27
    %s30 = ssub.s32 %s17, %s29
    %s31 = ssub.s32 %s18, %s25
    %s32 = sor.u32 %s30, %s31
    %p33 = scmp.eq.s32.totalorder %s32, 0
    %s35 = sadd.s32 %s34, 1
    %s36 = scalar_select %p33, %s34, %s35
    %p39 = pneg %p33
    %p40 = scmp.eq.s32.totalorder %s10, 1
    %p41 = por %p39, %p40
    %p42 = scmp.ne.s32.totalorder %s34, %s37
    %p43 = scmp.eq.s32.totalorder %s10, 0
    %p44 = por %p42, %p43
    %p45 = scmp.ne.s32.totalorder %s34, %s37
    %p46 = scmp.eq.s32.totalorder %s15, 1
    %p47 = por %p45, %p46
    %p48 = scmp.ne.s32.totalorder %s37, %s38
    %p49 = scmp.eq.s32.totalorder %s15, 0
    %p50 = por %p48, %p49
    %p51 = scmp.ne.s32.totalorder %s37, %s38
    %p52 = scmp.eq.s32.totalorder %s16, 1
    %p53 = por %p51, %p52
    %p55 = scmp.ne.s32.totalorder %s38, %s54
    %p56 = scmp.eq.s32.totalorder %s16, 0
    %p57 = por %p55, %p56
    %s59 = sadd.s32 %s58, 1
    %p62 = scmp.eq.s32.totalorder %s10, 1
    %p63 = scmp.ne.s32.totalorder %s58, %s60
    %p64 = scmp.eq.s32.totalorder %s10, 0
    %p65 = por %p63, %p64
    %p66 = scmp.ne.s32.totalorder %s58, %s60
    %p67 = scmp.eq.s32.totalorder %s15, 1
    %p68 = por %p66, %p67
    %p69 = scmp.ne.s32.totalorder %s60, %s61
    %p70 = scmp.eq.s32.totalorder %s15, 0
    %p71 = por %p69, %p70
    %p72 = scmp.ne.s32.totalorder %s60, %s61
    %p73 = scmp.eq.s32.totalorder %s16, 1
    %p74 = por %p72, %p73
    %p76 = scmp.ne.s32.totalorder %s61, %s75
    %p77 = scmp.eq.s32.totalorder %s16, 0
    %p78 = por %p76, %p77
    %s80 = sadd.s32 %s79, 1
    %p83 = scmp.eq.s32.totalorder %s10, 1
    %p84 = scmp.ne.s32.totalorder %s79, %s81
    %p85 = scmp.eq.s32.totalorder %s10, 0
    %p86 = por %p84, %p85
    %p87 = scmp.ne.s32.totalorder %s79, %s81
    %p88 = scmp.eq.s32.totalorder %s15, 1
    %p89 = por %p87, %p88
    %p90 = scmp.ne.s32.totalorder %s81, %s82
    %p91 = scmp.eq.s32.totalorder %s15, 0
    %p92 = por %p90, %p91
    %p93 = scmp.ne.s32.totalorder %s81, %s82
    %p94 = scmp.eq.s32.totalorder %s16, 1
    %p95 = por %p93, %p94
    %p97 = scmp.ne.s32.totalorder %s82, %s96
    %p98 = scmp.eq.s32.totalorder %s16, 0
    %p99 = por %p97, %p98
    %s101 = sadd.s32 %s100, 1
    %p104 = scmp.eq.s32.totalorder %s10, 1
    %p105 = scmp.ne.s32.totalorder %s100, %s102
    %p106 = scmp.eq.s32.totalorder %s10, 0
    %p107 = por %p105, %p106
    %p108 = scmp.ne.s32.totalorder %s100, %s102
    %p109 = scmp.eq.s32.totalorder %s15, 1
    %p110 = por %p108, %p109
    %p111 = scmp.ne.s32.totalorder %s102, %s103
    %p112 = scmp.eq.s32.totalorder %s15, 0
    %p113 = por %p111, %p112
    %p114 = scmp.ne.s32.totalorder %s102, %s103
    %p115 = scmp.eq.s32.totalorder %s16, 1
    %p116 = por %p114, %p115
    %p118 = scmp.ne.s32.totalorder %s103, %s117
    %p119 = scmp.eq.s32.totalorder %s16, 0
    %p120 = por %p118, %p119
    %s121 = ssub.s32 %s17, %s29
    %s122 = ssub.s32 %s18, %s25
    %s123 = sor.u32 %s121, %s122
    %p124 = scmp.eq.s32.totalorder %s123, 0
    %s126 = sadd.s32 %s125, 1
    %s127 = scalar_select %p124, %s125, %s126
    %p130 = pneg %p124
    %p131 = scmp.eq.s32.totalorder %s10, 1
    %p132 = por %p130, %p131
    %p133 = scmp.ne.s32.totalorder %s125, %s128
    %p134 = scmp.eq.s32.totalorder %s10, 0
    %p135 = por %p133, %p134
    %p136 = scmp.ne.s32.totalorder %s125, %s128
    %p137 = scmp.eq.s32.totalorder %s15, 1
    %p138 = por %p136, %p137
    %p139 = scmp.ne.s32.totalorder %s128, %s129
    %p140 = scmp.eq.s32.totalorder %s15, 0
    %p141 = por %p139, %p140
    %p142 = scmp.ne.s32.totalorder %s128, %s129
    %p143 = scmp.eq.s32.totalorder %s16, 1
    %p144 = por %p142, %p143
    %p146 = scmp.ne.s32.totalorder %s129, %s145
    %p147 = scmp.eq.s32.totalorder %s16, 0
    %p148 = por %p146, %p147
    %p149 = scmp.le.s32.totalorder 1, %s10
    %p150 = scmp.lt.s32.totalorder %s10, 3
    %p151 = pnand %p149, %p150
    %p152 = pneg %p151
    // Predicated region
    $region9: #{deconv_block_5x5.3} parent=5 // pred_check
      _
    $region10: #{deconv_block_5x5.3} parent=5 // pred_check_branch
      %154 = sbr.rel (%p151) target = $region12
    $region11: #{deconv_block_5x5.3} parent=5 // pred_region
      %s155 = ssub.s32 %s10, 1
      // Predicated region
      $region13: #{deconv_block_5x5.3} parent=11 // pred_check
        %p156 = pneg %p71
      $region14: #{deconv_block_5x5.3} parent=11 // pred_check_branch
        %158 = sbr.rel (%p156) target = $region16
      $region15: #{deconv_block_5x5.3} parent=11 // pred_region
        _
      $region16: #{deconv_block_5x5.3} parent=11 // pred_fallthru
        _
      // Predicated region
      $region17: #{deconv_block_5x5.3} parent=11 // pred_check
        %p159 = pneg %p92
      $region18: #{deconv_block_5x5.3} parent=11 // pred_check_branch
        %161 = sbr.rel (%p159) target = $region20
      $region19: #{deconv_block_5x5.3} parent=11 // pred_region
        _
      $region20: #{deconv_block_5x5.3} parent=11 // pred_fallthru
        _
      // Predicated region
      $region21: #{deconv_block_5x5.3} parent=11 // pred_check
        %p162 = pneg %p113
      $region22: #{deconv_block_5x5.3} parent=11 // pred_check_branch
        %164 = sbr.rel (%p162) target = $region24
      $region23: #{deconv_block_5x5.3} parent=11 // pred_region
        _
      $region24: #{deconv_block_5x5.3} parent=11 // pred_fallthru
        _
    $region12: #{deconv_block_5x5.3} parent=5 // pred_fallthru
      _
    %p165 = scmp.lt.s32.totalorder %s10, 2
    // Predicated region
    $region25: #{deconv_block_5x5.3} parent=5 // pred_check
      %p166 = pneg %p165
    $region26: #{deconv_block_5x5.3} parent=5 // pred_check_branch
      %168 = sbr.rel (%p166) target = $region28
    $region27: #{deconv_block_5x5.3} parent=5 // pred_region
      // Predicated region
      $region29: #{deconv_block_5x5.3} parent=27 // pred_check
        %p169 = pneg %p44
      $region30: #{deconv_block_5x5.3} parent=27 // pred_check_branch
        %171 = sbr.rel (%p169) target = $region32
      $region31: #{deconv_block_5x5.3} parent=27 // pred_region
        %s172 = smul.u32 2, %s18
        %p173 = scmp.lt.s32.totalorder %s17, 1
        %s174 = scalar_select %p173, %s17, 1
        %p175 = scmp.lt.s32.totalorder %s172, 1
        %s176 = scalar_select %p175, %s172, 1
        %s177 = smul.addr %s174, 2
        %s178 = sadd.s32 %s176, %s177
        %s179 = smul.addr %s178, 4
        %s180 = scalar_lea.vmem %s0, %s179
        %s181 = smul.u32 2, %s18
      $region32: #{deconv_block_5x5.3} parent=27 // pred_fallthru
        _
    $region28: #{deconv_block_5x5.3} parent=5 // pred_fallthru
      _
    %p182 = scmp.le.s32.totalorder 1, %s10
    %p183 = scmp.lt.s32.totalorder %s10, 3
    %p184 = pnand %p182, %p183
    %p185 = pneg %p184
    // Predicated region
    $region33: #{deconv_block_5x5.3} parent=5 // pred_check
      _
    $region34: #{deconv_block_5x5.3} parent=5 // pred_check_branch
      %187 = sbr.rel (%p184) target = $region36
    $region35: #{deconv_block_5x5.3} parent=5 // pred_region
      %s188 = ssub.s32 %s10, 1
      %s189 = smul.u32 2, %s20
      %p190 = scmp.lt.s32.totalorder %s19, 1
      %s191 = scalar_select %p190, %s19, 1
      %p192 = scmp.lt.s32.totalorder %s189, 1
      %s193 = scalar_select %p192, %s189, 1
      %s194 = smul.addr %s191, 2
      %s195 = sadd.s32 %s193, %s194
      %s196 = smul.addr %s195, 4
      %s197 = scalar_lea.vmem %s0, %s196
      %p198 = pneg %p50
      %p199 = pneg %p47
      %p200 = pneg %p71
      %p201 = pneg %p68
      %p202 = pneg %p92
      %p203 = pneg %p89
      %p204 = pneg %p113
      %p205 = pneg %p110
      %p206 = pneg %p141
      %p207 = pneg %p138
      %s208 = smul.u32 2, %s20
      %p209 = scmp.lt.s32.totalorder %s19, 1
      %s210 = scalar_select %p209, %s19, 1
      %p211 = scmp.lt.s32.totalorder %s208, 1
      %s212 = scalar_select %p211, %s208, 1
      %s213 = smul.addr %s210, 8
      %s214 = sadd.s32 %s212, %s213
      %s215 = smul.addr %s214, 8
      %s216 = scalar_lea.vmem %s4, %s215
      %s217 = smul.u32 2, %s20
      %p218 = scmp.lt.s32.totalorder %s19, 1
      %s219 = scalar_select %p218, %s19, 1
      %p220 = scmp.lt.s32.totalorder %s217, 1
      %s221 = scalar_select %p220, %s217, 1
      %s222 = smul.addr %s219, 2
      %s223 = sadd.s32 %s221, %s222
      %s224 = smul.addr %s223, 4
      %s225 = scalar_lea.vmem %s0, %s224
      %s226 = smul.u32 2, %s20
      %s227 = smul.u32 2, %s20
      %p228 = scmp.lt.s32.totalorder %s19, 1
      %s229 = scalar_select %p228, %s19, 1
      %p230 = scmp.lt.s32.totalorder %s227, 1
      %s231 = scalar_select %p230, %s227, 1
      %s232 = smul.addr %s229, 8
      %s233 = sadd.s32 %s231, %s232
      %s234 = smul.addr %s233, 8
      %s235 = scalar_lea.vmem %s4, %s234
      %s236 = smul.u32 2, %s20
      %v237 = vld [vmem:[%s1] sm:$0xff]
      %v238 = vld [vmem:[%s1 + $0x8] sm:$0xff]
      %v239 = vld [vmem:[%s1 + $0x10] sm:$0xff]
      %v240 = vld [vmem:[%s1 + $0x18] sm:$0xff]
      %v241 = vld [vmem:[%s225] sm:$0xff]
      %243 = vst [vmem:[#allocation1] ss:$2 sm:$0xff] %v241
      %v244 = vld.sshfl [vmem:[#allocation1] sm:$0xff pattern:$0x75316420]
      %v245 = vld.sshfl [vmem:[#allocation1 + $0x8] sm:$0xff pattern:$0x75316420]
      %vm246 = vcmask 31744
      %v248 = vsel %vm246, %v237, 0
      %v251 = vsel %vm246, %v238, 0
      %v254 = vsel %vm246, %v239, 0
      %v257 = vsel %vm246, %v240, 0
      %vm259 = vcmask 1043456
      %v260 = vsel %vm259, %v244, 0
      %v262 = vsel %vm259, %v245, 0
      %264 = vmatpush.msra.mxu0 0.0
      %265 = vmatpush.msra.mxu0 0.0
      %266 = vmatpush.msra.mxu0 0.0
      %267 = vmatpush.msra.mxu0 0.0
      %268 = vmatpush.msra.mxu0 0.0
      %269 = vmatpush.msra.mxu0 0.0
      %270 = vmatpush.msra.mxu0 0.0
      %271 = vmatpush.msra.mxu0 0.0
      %272 = vmatpush.msra.mxu0 0.0
      %273 = vmatpush.msra.mxu0 0.0
      %274 = vmatpush.msra.mxu0 0.0
      %275 = vmatpush.msra.mxu0 0.0
      %276 = vmatpush.msra.mxu0 0.0
      %277 = vmatpush.msra.mxu0 0.0
      %278 = vmatpush.msra.mxu0 0.0
      %279 = vmatpush.msra.mxu0 %v260
      %280 = vmatmul.f32.gmra.mxu0 %v248
      %v281 = vpop.f32.mrf.mxu0
      %v282 = vadd.f32 0.0, %v281
      %283 = vmatmul.f32.gmra.mxu0 %v251
      %v284 = vpop.f32.mrf.mxu0
      %v285 = vadd.f32 0.0, %v284
      %286 = vmatmul.f32.gmra.mxu0 %v254
      %v287 = vpop.f32.mrf.mxu0
      %v288 = vadd.f32 0.0, %v287
      %289 = vmatmul.f32.gmra.mxu0 %v257
      %v290 = vpop.f32.mrf.mxu0
      %v291 = vadd.f32 0.0, %v290
      %292 = vdwg.mxu0
      %293 = vmatpush.msra.mxu0 0.0
      %294 = vmatpush.msra.mxu0 0.0
      %295 = vmatpush.msra.mxu0 0.0
      %296 = vmatpush.msra.mxu0 0.0
      %297 = vmatpush.msra.mxu0 0.0
      %298 = vmatpush.msra.mxu0 0.0
      %299 = vmatpush.msra.mxu0 0.0
      %300 = vmatpush.msra.mxu0 0.0
      %301 = vmatpush.msra.mxu0 0.0
      %302 = vmatpush.msra.mxu0 0.0
      %303 = vmatpush.msra.mxu0 0.0
      %304 = vmatpush.msra.mxu0 0.0
      %305 = vmatpush.msra.mxu0 0.0
      %306 = vmatpush.msra.mxu0 0.0
      %307 = vmatpush.msra.mxu0 0.0
      %308 = vmatpush.msra.mxu0 %v262
      %309 = vmatmul.f32.gmra.mxu0 %v248
      %v310 = vpop.f32.mrf.mxu0
      %v311 = vadd.f32 0.0, %v310
      %312 = vmatmul.f32.gmra.mxu0 %v251
      %v313 = vpop.f32.mrf.mxu0
      %v314 = vadd.f32 0.0, %v313
      %315 = vmatmul.f32.gmra.mxu0 %v254
      %v316 = vpop.f32.mrf.mxu0
      %v317 = vadd.f32 0.0, %v316
      %318 = vmatmul.f32.gmra.mxu0 %v257
      %v319 = vpop.f32.mrf.mxu0
      %v320 = vadd.f32 0.0, %v319
      %321 = vdwg.mxu0
      %v322 = vmax.f32 %v282, 0.0
      %v323 = vmax.f32 %v311, 0.0
      %v324 = vmax.f32 %v285, 0.0
      %v325 = vmax.f32 %v314, 0.0
      %v326 = vmax.f32 %v288, 0.0
      %v327 = vmax.f32 %v317, 0.0
      %v328 = vmax.f32 %v291, 0.0
      %v329 = vmax.f32 %v320, 0.0
      %v330 = vld [vmem:[%s2] sm:$0xff]
      %v331 = vld [vmem:[%s2 + $0x8] sm:$0xff]
      %v332 = vld [vmem:[%s2 + $0x10] sm:$0xff]
      %v333 = vld [vmem:[%s2 + $0x18] sm:$0xff]
      %335 = vset.pattern.permute.xlu0 0
      %336 = vperm.xlu0 %335, %v330
      %v337 = vpop.permute.xlu0 %336
      %340 = vset.pattern.permute.xlu0 0
      %341 = vperm.xlu0 %340, %v331
      %v342 = vpop.permute.xlu0 %341
      %345 = vset.pattern.permute.xlu0 0
      %346 = vperm.xlu0 %345, %v332
      %v347 = vpop.permute.xlu0 %346
      %350 = vset.pattern.permute.xlu0 0
      %351 = vperm.xlu0 %350, %v333
      %v352 = vpop.permute.xlu0 %351
      %v354 = vmul.f32 %v322, %v337
      %v355 = vmul.f32 %v323, %v337
      %v356 = vmul.f32 %v324, %v342
      %v357 = vmul.f32 %v325, %v342
      %v358 = vmul.f32 %v326, %v347
      %v359 = vmul.f32 %v327, %v347
      %v360 = vmul.f32 %v328, %v352
      %v361 = vmul.f32 %v329, %v352
      %v362 = vld [vmem:[%s3] sm:$0xff]
      %v363 = vld [vmem:[%s3 + $0x8] sm:$0xff]
      %v364 = vld [vmem:[%s3 + $0x10] sm:$0xff]
      %v365 = vld [vmem:[%s3 + $0x18] sm:$0xff]
      %367 = vset.pattern.permute.xlu0 0
      %368 = vperm.xlu0 %367, %v362
      %v369 = vpop.permute.xlu0 %368
      %372 = vset.pattern.permute.xlu0 0
      %373 = vperm.xlu0 %372, %v363
      %v374 = vpop.permute.xlu0 %373
      %377 = vset.pattern.permute.xlu0 0
      %378 = vperm.xlu0 %377, %v364
      %v379 = vpop.permute.xlu0 %378
      %382 = vset.pattern.permute.xlu0 0
      %383 = vperm.xlu0 %382, %v365
      %v384 = vpop.permute.xlu0 %383
      %v386 = vadd.f32 %v354, %v369
      %v387 = vadd.f32 %v355, %v369
      %v388 = vadd.f32 %v356, %v374
      %v389 = vadd.f32 %v357, %v374
      %v390 = vadd.f32 %v358, %v379
      %v391 = vadd.f32 %v359, %v379
      %v392 = vadd.f32 %v360, %v384
      %v393 = vadd.f32 %v361, %v384
      %394 = vst [vmem:[%s235] sm:$0xff] %v386
      %395 = vst [vmem:[%s235 + $0x8] sm:$0xff] %v387
      %396 = vst [vmem:[%s235 + $0x10] sm:$0xff] %v388
      %397 = vst [vmem:[%s235 + $0x18] sm:$0xff] %v389
      %398 = vst [vmem:[%s235 + $0x20] sm:$0xff] %v390
      %399 = vst [vmem:[%s235 + $0x28] sm:$0xff] %v391
      %400 = vst [vmem:[%s235 + $0x30] sm:$0xff] %v392
      %401 = vst [vmem:[%s235 + $0x38] sm:$0xff] %v393
      %s402 = smul.u32 2, %s20
      %p403 = scmp.lt.s32.totalorder %s19, 1
      %s404 = scalar_select %p403, %s19, 1
      %p405 = scmp.lt.s32.totalorder %s402, 1
      %s406 = scalar_select %p405, %s402, 1
      %s407 = smul.addr %s404, 8
      %s408 = sadd.s32 %s406, %s407
      %s409 = smul.addr %s408, 8
      %s410 = scalar_lea.vmem %s4, %s409
      // Predicated region
      $region37: #{deconv_block_5x5.3} parent=35 // pred_check
        %p411 = pneg %p138
      $region38: #{deconv_block_5x5.3} parent=35 // pred_check_branch
        %413 = sbr.rel (%p411) target = $region40
      $region39: #{deconv_block_5x5.3} parent=35 // pred_region
        %s414 = smul.u32 2, %s20
      $region40: #{deconv_block_5x5.3} parent=35 // pred_fallthru
        _
    $region36: #{deconv_block_5x5.3} parent=5 // pred_fallthru
      _
    %p415 = scmp.le.s32.totalorder 2, %s10
    // Predicated region
    $region41: #{deconv_block_5x5.3} parent=5 // pred_check
      %p416 = pneg %p415
    $region42: #{deconv_block_5x5.3} parent=5 // pred_check_branch
      %418 = sbr.rel (%p416) target = $region44
    $region43: #{deconv_block_5x5.3} parent=5 // pred_region
      %s419 = ssub.s32 %s10, 2
      // Predicated region
      $region45: #{deconv_block_5x5.3} parent=43 // pred_check
        %p420 = pneg %p144
      $region46: #{deconv_block_5x5.3} parent=43 // pred_check_branch
        %422 = sbr.rel (%p420) target = $region48
      $region47: #{deconv_block_5x5.3} parent=43 // pred_region
        %s423 = smul.u32 2, %s22
        %p424 = scmp.lt.s32.totalorder %s21, 1
        %s425 = scalar_select %p424, %s21, 1
        %p426 = scmp.lt.s32.totalorder %s423, 1
        %s427 = scalar_select %p426, %s423, 1
        %s428 = smul.addr %s425, 8
        %s429 = sadd.s32 %s427, %s428
        %s430 = smul.addr %s429, 8
        %s431 = scalar_lea.vmem %s4, %s430
      $region48: #{deconv_block_5x5.3} parent=43 // pred_fallthru
        _
    $region44: #{deconv_block_5x5.3} parent=5 // pred_fallthru
      _
  $region6: #{deconv_block_5x5.3} parent=0 // loop_footer
    %s14 = sadd.s32 1, %s10
  $region7: #{deconv_block_5x5.3} parent=0 // loop_footer_branch
    %9 = sbr.rel target = $region3
  $region8: #{deconv_block_5x5.3} parent=0 // loop_exit
    _

</llo_original>
